<compile_context>
chip_gen: v5e
topology: v5e:2x2
jax: 0.10.0
libtpu: 0.0.40
codegen_flags: <defaults>
</compile_context>

<pallas_src>
import functools

import numpy as np
import jax
import jax.numpy as jnp
from jax.experimental import pallas as pl
from jax.experimental.pallas import tpu as pltpu


def _round_up(x, m):
    return ((x + m - 1) // m) * m


def _cdiv(a, b):
    return (a + b - 1) // b


def _vmem_capacity_bytes(default=64 << 20):
    """Physical VMEM per TensorCore; conservative (v7x) default if unknown."""
    try:
        cap = getattr(pltpu.get_tpu_info(), "vmem_capacity_bytes", None)
        if cap:
            return max(int(cap), 32 << 20)
    except Exception:
        pass
    return default


def _patch_merge_kernel(p_ref, w_ref, b_ref, g_ref, beta_ref, o_ref, *, e_true):
    """Fused (im2col-matmul conv) + bias + LayerNorm over the true channel count."""
    # Conv expressed as a single MXU matmul over the full (unpadded) K, f32 accumulation.
    x = jnp.dot(p_ref[...], w_ref[...], preferred_element_type=jnp.float32)
    x = x + b_ref[...]                                   # (tm, E_pad) + (1, E_pad)

    # LayerNorm over the true channel count E.  Padded lanes of x are *exactly* zero
    # (weight columns and bias beyond E are zero-padded), so plain sums over E_pad
    # already equal sums over E -- no iota/where masking needed.  eps matches torch.
    inv_e = jnp.float32(1.0 / e_true)
    mean = jnp.sum(x, axis=-1, keepdims=True) * inv_e
    ex2 = jnp.sum(x * x, axis=-1, keepdims=True) * inv_e
    var = jnp.maximum(ex2 - mean * mean, 0.0)
    y = (x - mean) * jax.lax.rsqrt(var + 1e-5)
    # Padded gamma/beta lanes are zero -> padded output lanes are zero (sliced off outside).
    o_ref[...] = (y * g_ref[...] + beta_ref[...]).astype(o_ref.dtype)


def overlap_patch_merging(x, weight, bias, gamma, beta, *, patch_size, stride, padding,
                          tile_m=1024, use_bf16=False, out_dtype=None,
                          lhs_buffers=2, min_grid_steps=2):
    """x: (B, C, H, W) NCHW; weight: (C_out, C_in, k, k) torch layout.

    Returns (out, Ho, Wo) with out of shape (B, Ho*Wo, C_out), matching the PyTorch
    OverlapPatchMerging.forward (Conv2d -> flatten(2).transpose(1,2) -> LayerNorm).

    use_bf16: cast conv operands to bf16 (f32 MXU accumulation).  Worthwhile on all
    TPU generations (v5e/v6e/v7x MXUs are bf16-native); off by default only so the
    f32 numerical test below stays at a tight tolerance.
    lhs_buffers: pipeline depth for the im2col input (sweep 3 on v7x small-K configs).
    """
    B, C, H, W = x.shape
    E = weight.shape[0]
    k = patch_size

    Ho = (H + 2 * padding - k) // stride + 1
    Wo = (W + 2 * padding - k) // stride + 1
    M = B * Ho * Wo
    K = C * k * k

    op_dtype = jnp.bfloat16 if use_bf16 else x.dtype
    out_dtype = x.dtype if out_dtype is None else out_dtype

    # ---- glue: im2col via a strided patch extraction (single HBM write of (M, K)) ----
    # Output feature ordering is (c, kh, kw) -> matches weight.reshape(E, C*k*k).
    # TODO(synk): fuse the im2col itself into the kernel (memory_space=pl.ANY input +
    # manual make_async_copy over (B, Ho)-row tiles) so the k^2/stride^2-expanded
    # patches matrix never materializes in HBM at all.
    patches = jax.lax.conv_general_dilated_patches(
        x.astype(op_dtype), filter_shape=(k, k), window_strides=(stride, stride),
        padding=((padding, padding), (padding, padding)),
        dimension_numbers=("NCHW", "OIHW", "NHWC"))
    patches2d = patches.reshape(M, K)                     # free reshape, no pad / no copy

    # Weight: (E, C, k, k) -> (K, E); pad ONLY the lane (E) dim to a multiple of 128
    # for lane-dense, unmasked output stores.  K stays unpadded.
    E_pad = _round_up(E, 128)
    w2d = jnp.pad(weight.reshape(E, K).T.astype(op_dtype), ((0, 0), (0, E_pad - E)))
    b2d = jnp.pad(bias.reshape(1, E).astype(jnp.float32), ((0, 0), (0, E_pad - E)))
    g2d = jnp.pad(gamma.reshape(1, E).astype(jnp.float32), ((0, 0), (0, E_pad - E)))
    beta2d = jnp.pad(beta.reshape(1, E).astype(jnp.float32), ((0, 0), (0, E_pad - E)))

    # ---- generation-aware tile / VMEM budgeting ----
    vmem_cap = _vmem_capacity_bytes()                     # 128 MiB v5e/v6e, 64 MiB v7x
    step_budget = min((vmem_cap * 5) // 8, 56 << 20)      # ~40 MiB v7x, 56 MiB v5e/v6e
    lhs_item = np.dtype(op_dtype).itemsize
    out_item = np.dtype(out_dtype).itemsize

    def _est_bytes(t):                                    # per-step VMEM footprint
        return (lhs_buffers * t * K * lhs_item            # pipelined im2col rows
                + 2 * t * E_pad * out_item                # double-buffered output tile
                + 1 * K * E_pad * lhs_item                # resident weight (Buffered(1))
                + 3 * E_pad * 4)                          # bias / gamma / beta (f32)

    sub = 16 if lhs_item == 2 else 8
    tm = _round_up(max(sub, min(tile_m, M)), sub)
    if M > sub:                                           # keep >= 2 grid steps: v7x
        tm = min(tm, _round_up(_cdiv(M, max(min_grid_steps, 2)), sub))  # megacore + overlap
    while tm > sub and _est_bytes(tm) > step_budget:
        tm = _round_up(tm // 2, sub)
    grid_m = _cdiv(M, tm)                                 # ragged last block is masked

    # Explicit scoped-VMEM limit (v5e's default is only 16 MiB); leave headroom for a
    # double-buffered weight in case the Buffered(1) fallback below is taken.
    vmem_limit = int(min(vmem_cap - (4 << 20),
                         step_budget + K * E_pad * lhs_item + (16 << 20)))

    kernel = functools.partial(_patch_merge_kernel, e_true=E)

    def _specs(single_buffer_consts, lhs_bufs):
        have_buffered = hasattr(pl, "Buffered")
        const_mode = pl.Buffered(1) if (single_buffer_consts and have_buffered) else None
        lhs_mode = pl.Buffered(lhs_bufs) if (lhs_bufs != 2 and have_buffered) else None

        def spec(shape, imap, mode):
            if mode is None:
                return pl.BlockSpec(shape, imap)
            return pl.BlockSpec(shape, imap, pipeline_mode=mode)

        return [
            spec((tm, K), lambda i: (i, 0), lhs_mode),        # im2col rows (pipelined)
            spec((K, E_pad), lambda i: (0, 0), const_mode),   # weight (resident)
            spec((1, E_pad), lambda i: (0, 0), const_mode),   # conv bias
            spec((1, E_pad), lambda i: (0, 0), const_mode),   # ln gamma
            spec((1, E_pad), lambda i: (0, 0), const_mode),   # ln beta
        ]

    def _call(in_specs):
        return pl.pallas_call(
            kernel,
            out_shape=jax.ShapeDtypeStruct((M, E_pad), out_dtype),
            grid_spec=pltpu.PrefetchScalarGridSpec(
                num_scalar_prefetch=0,
                grid=(grid_m,),
                in_specs=in_specs,
                out_specs=pl.BlockSpec((tm, E_pad), lambda i: (i, 0)),
            ),
            compiler_params=pltpu.CompilerParams(
                dimension_semantics=("parallel",),            # megacore sharding over M
                vmem_limit_bytes=vmem_limit),
        )(patches2d, w2d, b2d, g2d, beta2d)

    try:
        out2d = _call(_specs(single_buffer_consts=True, lhs_bufs=lhs_buffers))
    except Exception:
        # pipeline_mode / Buffered unsupported in this jax build -> default buffering
        # everywhere (slightly more VMEM, identical semantics).
        out2d = _call(_specs(single_buffer_consts=False, lhs_bufs=2))

    out = out2d if E_pad == E else out2d[:, :E]
    return out.reshape(B, Ho * Wo, E), Ho, Wo


def _reference(x, weight, bias, gamma, beta, *, patch_size, stride, padding):
    """Pure-JAX reference (lax conv + layernorm) mirroring the torch module."""
    y = jax.lax.conv_general_dilated(
        x, weight, window_strides=(stride, stride),
        padding=((padding, padding), (padding, padding)),
        dimension_numbers=("NCHW", "OIHW", "NCHW"))
    y = y + bias[None, :, None, None]
    B, E, Ho, Wo = y.shape
    y = y.reshape(B, E, Ho * Wo).transpose(0, 2, 1)
    mean = jnp.mean(y, axis=-1, keepdims=True)
    var = jnp.mean((y - mean) ** 2, axis=-1, keepdims=True)
    y = (y - mean) * jax.lax.rsqrt(var + 1e-5)
    return y * gamma + beta, Ho, Wo


if __name__ == "__main__":
    # SegFormer-ish stage at small shapes: in=4, embed=32, patch=7, stride=4, pad=3.
    B, C_in, H, W = 2, 4, 16, 16
    C_out, patch_size, stride, padding = 32, 7, 4, 3

    key = jax.random.PRNGKey(0)
    kx, kw, kb, kg, ke = jax.random.split(key, 5)
    x = jax.random.normal(kx, (B, C_in, H, W), dtype=jnp.float32)
    weight = jax.random.normal(kw, (C_out, C_in, patch_size, patch_size),
                               dtype=jnp.float32) * 0.05
    bias = jax.random.normal(kb, (C_out,), dtype=jnp.float32) * 0.05
    gamma = 1.0 + 0.1 * jax.random.normal(kg, (C_out,), dtype=jnp.float32)
    beta = 0.1 * jax.random.normal(ke, (C_out,), dtype=jnp.float32)

    out, Ho, Wo = overlap_patch_merging(
        x, weight, bias, gamma, beta,
        patch_size=patch_size, stride=stride, padding=padding)
    out = jax.block_until_ready(out)

    ref, Hr, Wr = _reference(x, weight, bias, gamma, beta,
                             patch_size=patch_size, stride=stride, padding=padding)
    assert out.shape == (B, Ho * Wo, C_out) and (Ho, Wo) == (Hr, Wr)
    assert jnp.max(jnp.abs(out - ref)) < 1e-4

    print("KERNEL_OK")
</pallas_src>

<mosaic_0001>
module attributes {stable_mosaic.version = 11 : i64} {
  func.func @_patch_merge_kernel(%arg0: i32, %arg1: memref<16x196xf32, #tpu.memory_space<vmem>>, %arg2: memref<196x128xf32, #tpu.memory_space<vmem>>, %arg3: memref<1x128xf32, #tpu.memory_space<vmem>>, %arg4: memref<1x128xf32, #tpu.memory_space<vmem>>, %arg5: memref<1x128xf32, #tpu.memory_space<vmem>>, %arg6: memref<16x128xf32, #tpu.memory_space<vmem>>) attributes {dimension_semantics = [#tpu.dimension_semantics<parallel>], iteration_bounds = array<i64: 2>, scalar_prefetch = 0 : i64, scratch_operands = 0 : i64, tpu.core_type = #tpu.core_type<tc>, window_params = [{transform_indices = @transform_0, window_bounds = array<i64: 16, 196>}, {pipeline_mode = #tpu.pipeline_mode<synchronous>, transform_indices = @transform_1, window_bounds = array<i64: 196, 128>}, {pipeline_mode = #tpu.pipeline_mode<synchronous>, transform_indices = @transform_2, window_bounds = array<i64: 1, 128>}, {pipeline_mode = #tpu.pipeline_mode<synchronous>, transform_indices = @transform_3, window_bounds = array<i64: 1, 128>}, {pipeline_mode = #tpu.pipeline_mode<synchronous>, transform_indices = @transform_4, window_bounds = array<i64: 1, 128>}, {transform_indices = @transform_5, window_bounds = array<i64: 16, 128>}]} {
    %c0 = arith.constant 0 : index
    %c0_0 = arith.constant 0 : index
    %0 = vector.load %arg1[%c0, %c0_0] : memref<16x196xf32, #tpu.memory_space<vmem>>, vector<16x196xf32>
    %c0_1 = arith.constant 0 : index
    %c0_2 = arith.constant 0 : index
    %1 = vector.load %arg2[%c0_1, %c0_2] : memref<196x128xf32, #tpu.memory_space<vmem>>, vector<196x128xf32>
    %cst = arith.constant dense<0.000000e+00> : vector<16x128xf32>
    %2 = tpu.matmul %0, %1, %cst {dimension_numbers = #tpu.dot_dimension_numbers<[1], [0], [0], [1], [0, 0, 1, 1], [], []>} : vector<16x196xf32>, vector<196x128xf32>, vector<16x128xf32> -> vector<16x128xf32>
    %c0_3 = arith.constant 0 : index
    %c0_4 = arith.constant 0 : index
    %3 = vector.load %arg3[%c0_3, %c0_4] : memref<1x128xf32, #tpu.memory_space<vmem>>, vector<1x128xf32>
    %4 = vector.broadcast %3 : vector<1x128xf32> to vector<16x128xf32>
    %5 = arith.addf %2, %4 : vector<16x128xf32>
    %cst_5 = arith.constant dense<0.000000e+00> : vector<16xf32>
    %6 = vector.multi_reduction <add>, %5, %cst_5 [1] : vector<16x128xf32> to vector<16xf32>
    %7 = vector.shape_cast %6 : vector<16xf32> to vector<16x1xf32>
    %cst_6 = arith.constant 3.125000e-02 : f32
    %8 = vector.broadcast %cst_6 : f32 to vector<16x1xf32>
    %9 = arith.mulf %7, %8 : vector<16x1xf32>
    %10 = arith.mulf %5, %5 : vector<16x128xf32>
    %cst_7 = arith.constant dense<0.000000e+00> : vector<16xf32>
    %11 = vector.multi_reduction <add>, %10, %cst_7 [1] : vector<16x128xf32> to vector<16xf32>
    %12 = vector.shape_cast %11 : vector<16xf32> to vector<16x1xf32>
    %cst_8 = arith.constant 3.125000e-02 : f32
    %13 = vector.broadcast %cst_8 : f32 to vector<16x1xf32>
    %14 = arith.mulf %12, %13 : vector<16x1xf32>
    %15 = arith.mulf %9, %9 : vector<16x1xf32>
    %16 = arith.subf %14, %15 : vector<16x1xf32>
    %cst_9 = arith.constant 0.000000e+00 : f32
    %17 = vector.broadcast %cst_9 : f32 to vector<16x1xf32>
    %18 = arith.maximumf %16, %17 : vector<16x1xf32>
    %19 = vector.broadcast %9 : vector<16x1xf32> to vector<16x128xf32>
    %20 = arith.subf %5, %19 : vector<16x128xf32>
    %cst_10 = arith.constant 9.99999974E-6 : f32
    %21 = vector.broadcast %cst_10 : f32 to vector<16x1xf32>
    %22 = arith.addf %18, %21 : vector<16x1xf32>
    %23 = math.rsqrt %22 : vector<16x1xf32>
    %24 = vector.broadcast %23 : vector<16x1xf32> to vector<16x128xf32>
    %25 = arith.mulf %20, %24 : vector<16x128xf32>
    %c0_11 = arith.constant 0 : index
    %c0_12 = arith.constant 0 : index
    %26 = vector.load %arg4[%c0_11, %c0_12] : memref<1x128xf32, #tpu.memory_space<vmem>>, vector<1x128xf32>
    %27 = vector.broadcast %26 : vector<1x128xf32> to vector<16x128xf32>
    %28 = arith.mulf %25, %27 : vector<16x128xf32>
    %c0_13 = arith.constant 0 : index
    %c0_14 = arith.constant 0 : index
    %29 = vector.load %arg5[%c0_13, %c0_14] : memref<1x128xf32, #tpu.memory_space<vmem>>, vector<1x128xf32>
    %30 = vector.broadcast %29 : vector<1x128xf32> to vector<16x128xf32>
    %31 = arith.addf %28, %30 : vector<16x128xf32>
    %c0_15 = arith.constant 0 : index
    %c0_16 = arith.constant 0 : index
    %32 = vector.load %arg6[%c0_15, %c0_16] : memref<16x128xf32, #tpu.memory_space<vmem>>, vector<16x128xf32>
    tpu.vector_store %arg6[%c0_15, %c0_16], %31 {strides = array<i32>} : memref<16x128xf32, #tpu.memory_space<vmem>>, vector<16x128xf32>,
    return
  }
  func.func @transform_0(%arg0: i32) -> (i32, i32) {
    %c0_i32 = arith.constant 0 : i32
    %c0_i32_0 = arith.constant 0 : i32
    return %arg0, %c0_i32 : i32, i32
  }
  func.func @transform_1(%arg0: i32) -> (i32, i32) {
    %c0_i32 = arith.constant 0 : i32
    %c0_i32_0 = arith.constant 0 : i32
    %c0_i32_1 = arith.constant 0 : i32
    return %c0_i32, %c0_i32_0 : i32, i32
  }
  func.func @transform_2(%arg0: i32) -> (i32, i32) {
    %c0_i32 = arith.constant 0 : i32
    %c0_i32_0 = arith.constant 0 : i32
    %c0_i32_1 = arith.constant 0 : i32
    return %c0_i32, %c0_i32_0 : i32, i32
  }
  func.func @transform_3(%arg0: i32) -> (i32, i32) {
    %c0_i32 = arith.constant 0 : i32
    %c0_i32_0 = arith.constant 0 : i32
    %c0_i32_1 = arith.constant 0 : i32
    return %c0_i32, %c0_i32_0 : i32, i32
  }
  func.func @transform_4(%arg0: i32) -> (i32, i32) {
    %c0_i32 = arith.constant 0 : i32
    %c0_i32_0 = arith.constant 0 : i32
    %c0_i32_1 = arith.constant 0 : i32
    return %c0_i32, %c0_i32_0 : i32, i32
  }
  func.func @transform_5(%arg0: i32) -> (i32, i32) {
    %c0_i32 = arith.constant 0 : i32
    %c0_i32_0 = arith.constant 0 : i32
    return %arg0, %c0_i32 : i32, i32
  }
}

module attributes {stable_mosaic.version = 11 : i64} {
  func.func @_patch_merge_kernel(%arg0: i32, %arg1: memref<16x196xf32, #tpu.memory_space<vmem>>, %arg2: memref<196x128xf32, #tpu.memory_space<vmem>>, %arg3: memref<1x128xf32, #tpu.memory_space<vmem>>, %arg4: memref<1x128xf32, #tpu.memory_space<vmem>>, %arg5: memref<1x128xf32, #tpu.memory_space<vmem>>, %arg6: memref<16x128xf32, #tpu.memory_space<vmem>>) attributes {dimension_semantics = [#tpu.dimension_semantics<parallel>], iteration_bounds = array<i64: 2>, scalar_prefetch = 0 : i64, scratch_operands = 0 : i64, tpu.core_type = #tpu.core_type<tc>, window_params = [{transform_indices = @transform_0, window_bounds = array<i64: 16, 196>}, {pipeline_mode = #tpu.pipeline_mode<synchronous>, transform_indices = @transform_1, window_bounds = array<i64: 196, 128>}, {pipeline_mode = #tpu.pipeline_mode<synchronous>, transform_indices = @transform_2, window_bounds = array<i64: 1, 128>}, {pipeline_mode = #tpu.pipeline_mode<synchronous>, transform_indices = @transform_3, window_bounds = array<i64: 1, 128>}, {pipeline_mode = #tpu.pipeline_mode<synchronous>, transform_indices = @transform_4, window_bounds = array<i64: 1, 128>}, {transform_indices = @transform_5, window_bounds = array<i64: 16, 128>}]} {
    %c0 = arith.constant 0 : index
    %c0_0 = arith.constant 0 : index
    %0 = vector.load %arg1[%c0, %c0_0] : memref<16x196xf32, #tpu.memory_space<vmem>>, vector<16x196xf32>
    %c0_1 = arith.constant 0 : index
    %c0_2 = arith.constant 0 : index
    %1 = vector.load %arg2[%c0_1, %c0_2] : memref<196x128xf32, #tpu.memory_space<vmem>>, vector<196x128xf32>
    %cst = arith.constant dense<0.000000e+00> : vector<16x128xf32>
    %2 = tpu.matmul %0, %1, %cst {dimension_numbers = #tpu.dot_dimension_numbers<[1], [0], [0], [1], [0, 0, 1, 1], [], []>} : vector<16x196xf32>, vector<196x128xf32>, vector<16x128xf32> -> vector<16x128xf32>
    %c0_3 = arith.constant 0 : index
    %c0_4 = arith.constant 0 : index
    %3 = vector.load %arg3[%c0_3, %c0_4] : memref<1x128xf32, #tpu.memory_space<vmem>>, vector<1x128xf32>
    %4 = vector.broadcast %3 : vector<1x128xf32> to vector<16x128xf32>
    %5 = arith.addf %2, %4 : vector<16x128xf32>
    %cst_5 = arith.constant dense<0.000000e+00> : vector<16xf32>
    %6 = vector.multi_reduction <add>, %5, %cst_5 [1] : vector<16x128xf32> to vector<16xf32>
    %7 = vector.shape_cast %6 : vector<16xf32> to vector<16x1xf32>
    %cst_6 = arith.constant 3.125000e-02 : f32
    %8 = vector.broadcast %cst_6 : f32 to vector<16x1xf32>
    %9 = arith.mulf %7, %8 : vector<16x1xf32>
    %10 = arith.mulf %5, %5 : vector<16x128xf32>
    %cst_7 = arith.constant dense<0.000000e+00> : vector<16xf32>
    %11 = vector.multi_reduction <add>, %10, %cst_7 [1] : vector<16x128xf32> to vector<16xf32>
    %12 = vector.shape_cast %11 : vector<16xf32> to vector<16x1xf32>
    %cst_8 = arith.constant 3.125000e-02 : f32
    %13 = vector.broadcast %cst_8 : f32 to vector<16x1xf32>
    %14 = arith.mulf %12, %13 : vector<16x1xf32>
    %15 = arith.mulf %9, %9 : vector<16x1xf32>
    %16 = arith.subf %14, %15 : vector<16x1xf32>
    %cst_9 = arith.constant 0.000000e+00 : f32
    %17 = vector.broadcast %cst_9 : f32 to vector<16x1xf32>
    %18 = arith.maximumf %16, %17 : vector<16x1xf32>
    %19 = vector.broadcast %9 : vector<16x1xf32> to vector<16x128xf32>
    %20 = arith.subf %5, %19 : vector<16x128xf32>
    %cst_10 = arith.constant 9.99999974E-6 : f32
    %21 = vector.broadcast %cst_10 : f32 to vector<16x1xf32>
    %22 = arith.addf %18, %21 : vector<16x1xf32>
    %23 = math.rsqrt %22 : vector<16x1xf32>
    %24 = vector.broadcast %23 : vector<16x1xf32> to vector<16x128xf32>
    %25 = arith.mulf %20, %24 : vector<16x128xf32>
    %c0_11 = arith.constant 0 : index
    %c0_12 = arith.constant 0 : index
    %26 = vector.load %arg4[%c0_11, %c0_12] : memref<1x128xf32, #tpu.memory_space<vmem>>, vector<1x128xf32>
    %27 = vector.broadcast %26 : vector<1x128xf32> to vector<16x128xf32>
    %28 = arith.mulf %25, %27 : vector<16x128xf32>
    %c0_13 = arith.constant 0 : index
    %c0_14 = arith.constant 0 : index
    %29 = vector.load %arg5[%c0_13, %c0_14] : memref<1x128xf32, #tpu.memory_space<vmem>>, vector<1x128xf32>
    %30 = vector.broadcast %29 : vector<1x128xf32> to vector<16x128xf32>
    %31 = arith.addf %28, %30 : vector<16x128xf32>
    %c0_15 = arith.constant 0 : index
    %c0_16 = arith.constant 0 : index
    %32 = vector.load %arg6[%c0_15, %c0_16] : memref<16x128xf32, #tpu.memory_space<vmem>>, vector<16x128xf32>
    tpu.vector_store %arg6[%c0_15, %c0_16], %31 {strides = array<i32>} : memref<16x128xf32, #tpu.memory_space<vmem>>, vector<16x128xf32>,
    return
  }
  func.func @transform_0(%arg0: i32) -> (i32, i32) {
    %c0_i32 = arith.constant 0 : i32
    %c0_i32_0 = arith.constant 0 : i32
    return %arg0, %c0_i32 : i32, i32
  }
  func.func @transform_1(%arg0: i32) -> (i32, i32) {
    %c0_i32 = arith.constant 0 : i32
    %c0_i32_0 = arith.constant 0 : i32
    %c0_i32_1 = arith.constant 0 : i32
    return %c0_i32, %c0_i32_0 : i32, i32
  }
  func.func @transform_2(%arg0: i32) -> (i32, i32) {
    %c0_i32 = arith.constant 0 : i32
    %c0_i32_0 = arith.constant 0 : i32
    %c0_i32_1 = arith.constant 0 : i32
    return %c0_i32, %c0_i32_0 : i32, i32
  }
  func.func @transform_3(%arg0: i32) -> (i32, i32) {
    %c0_i32 = arith.constant 0 : i32
    %c0_i32_0 = arith.constant 0 : i32
    %c0_i32_1 = arith.constant 0 : i32
    return %c0_i32, %c0_i32_0 : i32, i32
  }
  func.func @transform_4(%arg0: i32) -> (i32, i32) {
    %c0_i32 = arith.constant 0 : i32
    %c0_i32_0 = arith.constant 0 : i32
    %c0_i32_1 = arith.constant 0 : i32
    return %c0_i32, %c0_i32_0 : i32, i32
  }
  func.func @transform_5(%arg0: i32) -> (i32, i32) {
    %c0_i32 = arith.constant 0 : i32
    %c0_i32_0 = arith.constant 0 : i32
    return %arg0, %c0_i32 : i32, i32
  }
}

</mosaic_0001>

<llo_original>
// kernel: tpu_custom_call.1
$region0: #{tpu_custom_call.1}
  #allocation0 [shape = 'u32[]', space=smem, size = 0x4, offset = 0x4, fixed_abs, tag = 'smem constant byte address 0x4 - core index']
  #allocation1 [shape = 'u32[72,128]{1,0:T(1,128)}', space=vmem, size = 0x9000, scoped, tag = 'internal scratch']
  %s0 = inlined_call_operand.hbm [shape: f32[32,196], index: 0, kind: input, shape index: {}]
  %s1 = inlined_call_operand.hbm [shape: f32[196,128], index: 1, kind: input, shape index: {}]
  %s2 = inlined_call_operand.vmem [shape: f32[1,128], index: 2, kind: input, shape index: {}]
  %s3 = inlined_call_operand.vmem [shape: f32[1,128], index: 3, kind: input, shape index: {}]
  %s4 = inlined_call_operand.vmem [shape: f32[1,128], index: 4, kind: input, shape index: {}]
  %s5 = inlined_call_operand.hbm [shape: f32[32,128], index: 5, kind: output, shape index: {}]
  %s6 = sld [smem:[#allocation0]]
  $region61: #{tpu_custom_call.1} parent=0
    _
  %s8 = ssub.s32 1, %s6
  %s9 = scalar_select 0, %s8, %s6
  $region1: #{tpu_custom_call.1} parent=0
    #allocation2 [shape = 'u8[32768]{0}', space=vmem, size = 0x8000, scoped, tag = 'input window, operand 0']
    #allocation3 [shape = 's32[2]{0}', space=sflag, size = 0x8, scoped, tag = 'scoped memory for tpu_custom_call.1']
    #allocation4 [shape = 's32[2]{0}', space=sflag, size = 0x8, scoped, tag = 'scoped memory for tpu_custom_call.1']
    #allocation5 [shape = 'u8[102400]{0}', space=vmem, size = 0x19000, scoped, tag = 'input window, operand 1, single buffered']
    #allocation6 [shape = 's32[1]{0}', space=sflag, size = 0x4, scoped, tag = 'scoped memory for tpu_custom_call.1']
    #allocation7 [shape = 'u8[16384]{0}', space=vmem, size = 0x4000, scoped, tag = 'output window, operand 0']
    %10 = vsyncpa [#allocation3], 0
    %s11 = scalar_lea.sflag [#allocation3], 1
    %12 = vsyncpa %s11, 0
    %13 = vsyncpa [#allocation6], 0
    %14 = vsyncpa [#allocation4], 0
    %s15 = scalar_lea.sflag [#allocation4], 1
    %16 = vsyncpa %s15, 0
    loop: start=0, step=1, limit=4
    $region2: #{tpu_custom_call.1} parent=1 // loop_pre_header
      _
    $region3: #{tpu_custom_call.1} parent=1 // loop_header
      %s18 = sphi 0, %s22
      %p19 = scmp.ge.s32.totalorder %s18, 4
      %s28 = sphi 0, %s30
      %s31 = sphi 0, %s28
      %s32 = sphi 0, %s31
      %s48 = sphi 0, %s32
      %s52 = sphi 0, %s52
      %s54 = sphi 0, %s52
      %s55 = sphi 0, %s54
      %s69 = sphi 0, %s55
      %s73 = sphi 0, %s73
      %s75 = sphi 0, %s73
      %s76 = sphi 0, %s75
      %s90 = sphi 0, %s76
      %s94 = sphi 0, %s94
      %s96 = sphi 0, %s94
      %s97 = sphi 0, %s96
      %s111 = sphi 0, %s97
      %s115 = sphi 0, %s115
      %s117 = sphi 0, %s115
      %s118 = sphi 0, %s117
      %s132 = sphi 0, %s118
      %s138 = sphi 0, %s140
      %s141 = sphi 0, %s138
      %s142 = sphi 0, %s141
      %s158 = sphi 0, %s142
    $region4: #{tpu_custom_call.1} parent=1 // loop_header_branch
      %21 = sbr.rel (%p19) target = $region8
    $region5: #{tpu_custom_call.1} parent=1 // loop_body
      %s23 = ssub.s32 %s18, 1
      %s24 = ssub.s32 %s18, 2
      %s25 = sadd.s32 %s18, 1
      %s26 = ssub.s32 %s18, %s25
      %p27 = scmp.eq.s32.totalorder %s26, 0
      %s29 = sadd.s32 %s28, 1
      %s30 = scalar_select %p27, %s28, %s29
      %p33 = pneg %p27
      %p34 = scmp.eq.s32.totalorder %s18, 1
      %p35 = por %p33, %p34
      %p36 = scmp.ne.s32.totalorder %s28, %s31
      %p37 = scmp.eq.s32.totalorder %s18, 0
      %p38 = por %p36, %p37
      %p39 = scmp.ne.s32.totalorder %s28, %s31
      %p40 = scmp.eq.s32.totalorder %s23, 1
      %p41 = por %p39, %p40
      %p42 = scmp.ne.s32.totalorder %s31, %s32
      %p43 = scmp.eq.s32.totalorder %s23, 0
      %p44 = por %p42, %p43
      %p45 = scmp.ne.s32.totalorder %s31, %s32
      %p46 = scmp.eq.s32.totalorder %s24, 1
      %p47 = por %p45, %p46
      %p49 = scmp.ne.s32.totalorder %s32, %s48
      %p50 = scmp.eq.s32.totalorder %s24, 0
      %p51 = por %p49, %p50
      %s53 = sadd.s32 %s52, 1
      %p56 = scmp.eq.s32.totalorder %s18, 1
      %p57 = scmp.ne.s32.totalorder %s52, %s54
      %p58 = scmp.eq.s32.totalorder %s18, 0
      %p59 = por %p57, %p58
      %p60 = scmp.ne.s32.totalorder %s52, %s54
      %p61 = scmp.eq.s32.totalorder %s23, 1
      %p62 = por %p60, %p61
      %p63 = scmp.ne.s32.totalorder %s54, %s55
      %p64 = scmp.eq.s32.totalorder %s23, 0
      %p65 = por %p63, %p64
      %p66 = scmp.ne.s32.totalorder %s54, %s55
      %p67 = scmp.eq.s32.totalorder %s24, 1
      %p68 = por %p66, %p67
      %p70 = scmp.ne.s32.totalorder %s55, %s69
      %p71 = scmp.eq.s32.totalorder %s24, 0
      %p72 = por %p70, %p71
      %s74 = sadd.s32 %s73, 1
      %p77 = scmp.eq.s32.totalorder %s18, 1
      %p78 = scmp.ne.s32.totalorder %s73, %s75
      %p79 = scmp.eq.s32.totalorder %s18, 0
      %p80 = por %p78, %p79
      %p81 = scmp.ne.s32.totalorder %s73, %s75
      %p82 = scmp.eq.s32.totalorder %s23, 1
      %p83 = por %p81, %p82
      %p84 = scmp.ne.s32.totalorder %s75, %s76
      %p85 = scmp.eq.s32.totalorder %s23, 0
      %p86 = por %p84, %p85
      %p87 = scmp.ne.s32.totalorder %s75, %s76
      %p88 = scmp.eq.s32.totalorder %s24, 1
      %p89 = por %p87, %p88
      %p91 = scmp.ne.s32.totalorder %s76, %s90
      %p92 = scmp.eq.s32.totalorder %s24, 0
      %p93 = por %p91, %p92
      %s95 = sadd.s32 %s94, 1
      %p98 = scmp.eq.s32.totalorder %s18, 1
      %p99 = scmp.ne.s32.totalorder %s94, %s96
      %p100 = scmp.eq.s32.totalorder %s18, 0
      %p101 = por %p99, %p100
      %p102 = scmp.ne.s32.totalorder %s94, %s96
      %p103 = scmp.eq.s32.totalorder %s23, 1
      %p104 = por %p102, %p103
      %p105 = scmp.ne.s32.totalorder %s96, %s97
      %p106 = scmp.eq.s32.totalorder %s23, 0
      %p107 = por %p105, %p106
      %p108 = scmp.ne.s32.totalorder %s96, %s97
      %p109 = scmp.eq.s32.totalorder %s24, 1
      %p110 = por %p108, %p109
      %p112 = scmp.ne.s32.totalorder %s97, %s111
      %p113 = scmp.eq.s32.totalorder %s24, 0
      %p114 = por %p112, %p113
      %s116 = sadd.s32 %s115, 1
      %p119 = scmp.eq.s32.totalorder %s18, 1
      %p120 = scmp.ne.s32.totalorder %s115, %s117
      %p121 = scmp.eq.s32.totalorder %s18, 0
      %p122 = por %p120, %p121
      %p123 = scmp.ne.s32.totalorder %s115, %s117
      %p124 = scmp.eq.s32.totalorder %s23, 1
      %p125 = por %p123, %p124
      %p126 = scmp.ne.s32.totalorder %s117, %s118
      %p127 = scmp.eq.s32.totalorder %s23, 0
      %p128 = por %p126, %p127
      %p129 = scmp.ne.s32.totalorder %s117, %s118
      %p130 = scmp.eq.s32.totalorder %s24, 1
      %p131 = por %p129, %p130
      %p133 = scmp.ne.s32.totalorder %s118, %s132
      %p134 = scmp.eq.s32.totalorder %s24, 0
      %p135 = por %p133, %p134
      %s136 = ssub.s32 %s18, %s25
      %p137 = scmp.eq.s32.totalorder %s136, 0
      %s139 = sadd.s32 %s138, 1
      %s140 = scalar_select %p137, %s138, %s139
      %p143 = pneg %p137
      %p144 = scmp.eq.s32.totalorder %s18, 1
      %p145 = por %p143, %p144
      %p146 = scmp.ne.s32.totalorder %s138, %s141
      %p147 = scmp.eq.s32.totalorder %s18, 0
      %p148 = por %p146, %p147
      %p149 = scmp.ne.s32.totalorder %s138, %s141
      %p150 = scmp.eq.s32.totalorder %s23, 1
      %p151 = por %p149, %p150
      %p152 = scmp.ne.s32.totalorder %s141, %s142
      %p153 = scmp.eq.s32.totalorder %s23, 0
      %p154 = por %p152, %p153
      %p155 = scmp.ne.s32.totalorder %s141, %s142
      %p156 = scmp.eq.s32.totalorder %s24, 1
      %p157 = por %p155, %p156
      %p159 = scmp.ne.s32.totalorder %s142, %s158
      %p160 = scmp.eq.s32.totalorder %s24, 0
      %p161 = por %p159, %p160
      %p162 = scmp.le.s32.totalorder 1, %s18
      %p163 = scmp.lt.s32.totalorder %s18, 3
      %p164 = pnand %p162, %p163
      %p165 = pneg %p164
      // Predicated region
      $region9: #{tpu_custom_call.1} parent=5 // pred_check
        _
      $region10: #{tpu_custom_call.1} parent=5 // pred_check_branch
        %167 = sbr.rel (%p164) target = $region12
      $region11: #{tpu_custom_call.1} parent=5 // pred_region
        %s168 = ssub.s32 %s18, 1
        // Predicated region
        $region13: #{tpu_custom_call.1} parent=11 // pred_check
          %p169 = pneg %p65
        $region14: #{tpu_custom_call.1} parent=11 // pred_check_branch
          %171 = sbr.rel (%p169) target = $region16
        $region15: #{tpu_custom_call.1} parent=11 // pred_region
          %173 = vsyncadd [#allocation6], 0
          %s174 = sshll.u32 %s1, 4
          %s175 = int_to_ptr.hbm [resolvable:$true] %s174
          %s176 = sshll.u32 [#allocation5], 4
          %s177 = int_to_ptr.vmem [resolvable:$true] %s176
          %182 = dma.hbm_to_vmem [thread:$0]  %s175, 3200, %s177, [#allocation6], 128, 128, 8
        $region16: #{tpu_custom_call.1} parent=11 // pred_fallthru
          _
        // Predicated region
        $region17: #{tpu_custom_call.1} parent=11 // pred_check
          %p183 = pneg %p86
        $region18: #{tpu_custom_call.1} parent=11 // pred_check_branch
          %185 = sbr.rel (%p183) target = $region20
        $region19: #{tpu_custom_call.1} parent=11 // pred_region
          _
        $region20: #{tpu_custom_call.1} parent=11 // pred_fallthru
          _
        // Predicated region
        $region21: #{tpu_custom_call.1} parent=11 // pred_check
          %p186 = pneg %p107
        $region22: #{tpu_custom_call.1} parent=11 // pred_check_branch
          %188 = sbr.rel (%p186) target = $region24
        $region23: #{tpu_custom_call.1} parent=11 // pred_region
          _
        $region24: #{tpu_custom_call.1} parent=11 // pred_fallthru
          _
        // Predicated region
        $region25: #{tpu_custom_call.1} parent=11 // pred_check
          %p189 = pneg %p128
        $region26: #{tpu_custom_call.1} parent=11 // pred_check_branch
          %191 = sbr.rel (%p189) target = $region28
        $region27: #{tpu_custom_call.1} parent=11 // pred_region
          _
        $region28: #{tpu_custom_call.1} parent=11 // pred_fallthru
          _
      $region12: #{tpu_custom_call.1} parent=5 // pred_fallthru
        _
      %p192 = scmp.lt.s32.totalorder %s18, 2
      // Predicated region
      $region29: #{tpu_custom_call.1} parent=5 // pred_check
        %p193 = pneg %p192
      $region30: #{tpu_custom_call.1} parent=5 // pred_check_branch
        %195 = sbr.rel (%p193) target = $region32
      $region31: #{tpu_custom_call.1} parent=5 // pred_region
        // Predicated region
        $region33: #{tpu_custom_call.1} parent=31 // pred_check
          %p196 = pneg %p38
        $region34: #{tpu_custom_call.1} parent=31 // pred_check_branch
          %198 = sbr.rel (%p196) target = $region36
        $region35: #{tpu_custom_call.1} parent=31 // pred_region
          %s199 = sand.u32 %s28, 1
          %s200 = scalar_lea.sflag [#allocation3], %s199
          %s201 = sand.u32 %s28, 1
          %s202 = smul.addr %s201, 32
          %s203 = scalar_lea.vmem [#allocation2], %s202
          %s204 = smul.u32 2, %s18
          %206 = vsyncadd %s200, 0
          %s207 = smul.addr %s204, 2
          %s208 = smul.addr %s207, 8
          %s209 = scalar_lea.hbm %s0, %s208
          %s210 = sshll.u32 %s209, 4
          %s211 = int_to_ptr.hbm [resolvable:$true] %s210
          %s212 = sshll.u32 %s203, 4
          %s213 = int_to_ptr.vmem [resolvable:$true] %s212
          %218 = dma.hbm_to_vmem [thread:$0]  %s211, 512, %s213, %s200, 256, 256, 16
        $region36: #{tpu_custom_call.1} parent=31 // pred_fallthru
          _
      $region32: #{tpu_custom_call.1} parent=5 // pred_fallthru
        _
      %p219 = scmp.le.s32.totalorder 1, %s18
      %p220 = scmp.lt.s32.totalorder %s18, 3
      %p221 = pnand %p219, %p220
      %p222 = pneg %p221
      // Predicated region
      $region37: #{tpu_custom_call.1} parent=5 // pred_check
        _
      $region38: #{tpu_custom_call.1} parent=5 // pred_check_branch
        %224 = sbr.rel (%p221) target = $region40
      $region39: #{tpu_custom_call.1} parent=5 // pred_region
        %s225 = ssub.s32 %s18, 1
        %s226 = sand.u32 %s31, 1
        %s227 = scalar_lea.sflag [#allocation3], %s226
        %s228 = sand.u32 %s31, 1
        %s229 = smul.addr %s228, 32
        %s230 = scalar_lea.vmem [#allocation2], %s229
        // Predicated region
        $region41: #{tpu_custom_call.1} parent=39 // pred_check
          %p231 = pneg %p44
        $region42: #{tpu_custom_call.1} parent=39 // pred_check_branch
          %233 = sbr.rel (%p231) target = $region44
        $region43: #{tpu_custom_call.1} parent=39 // pred_region
          %235 = dma.done %s227, 512
        $region44: #{tpu_custom_call.1} parent=39 // pred_fallthru
          _
        // Predicated region
        $region45: #{tpu_custom_call.1} parent=39 // pred_check
          %p236 = pneg %p65
        $region46: #{tpu_custom_call.1} parent=39 // pred_check_branch
          %238 = sbr.rel (%p236) target = $region48
        $region47: #{tpu_custom_call.1} parent=39 // pred_region
          %240 = dma.done [#allocation6], 3200
        $region48: #{tpu_custom_call.1} parent=39 // pred_fallthru
          _
        %s241 = sand.u32 %s31, 1
        %s242 = scalar_lea.sflag [#allocation3], %s241
        %s243 = sand.u32 %s31, 1
        %s244 = smul.addr %s243, 32
        %s245 = scalar_lea.vmem [#allocation2], %s244
        %p246 = pneg %p44
        %p247 = pneg %p41
        %p248 = pneg %p65
        %p249 = pneg %p62
        %p250 = pneg %p86
        %p251 = pneg %p83
        %p252 = pneg %p107
        %p253 = pneg %p104
        %p254 = pneg %p128
        %p255 = pneg %p125
        %p256 = pneg %p154
        %p257 = pneg %p151
        %s258 = sand.u32 %s141, 1
        %s259 = scalar_lea.sflag [#allocation4], %s258
        %s260 = sand.u32 %s141, 1
        %s261 = smul.addr %s260, 16
        %s262 = scalar_lea.vmem [#allocation7], %s261
        %s263 = smul.u32 2, %s23
        %s264 = smul.u32 2, %s23
        %v265 = vld [vmem:[%s230] sm:$0xff]
        %v266 = vld [vmem:[%s230 + $0x8] sm:$0xff]
        %v267 = vld [vmem:[%s230 + $0x10] sm:$0xff]
        %v268 = vld [vmem:[%s230 + $0x18] sm:$0xff]
        %v269 = vld [vmem:[#allocation5] sm:$0xff]
        %v270 = vld [vmem:[#allocation5 + $0x8] sm:$0xff]
        %v271 = vld [vmem:[#allocation5 + $0x10] sm:$0xff]
        %v272 = vld [vmem:[#allocation5 + $0x18] sm:$0xff]
        %v273 = vld [vmem:[#allocation5 + $0x20] sm:$0xff]
        %v274 = vld [vmem:[#allocation5 + $0x28] sm:$0xff]
        %v275 = vld [vmem:[#allocation5 + $0x30] sm:$0xff]
        %v276 = vld [vmem:[#allocation5 + $0x38] sm:$0xff]
        %v277 = vld [vmem:[#allocation5 + $0x40] sm:$0xff]
        %v278 = vld [vmem:[#allocation5 + $0x48] sm:$0xff]
        %v279 = vld [vmem:[#allocation5 + $0x50] sm:$0xff]
        %v280 = vld [vmem:[#allocation5 + $0x58] sm:$0xff]
        %v281 = vld [vmem:[#allocation5 + $0x60] sm:$0xff]
        %v282 = vld [vmem:[#allocation5 + $0x68] sm:$0xff]
        %v283 = vld [vmem:[#allocation5 + $0x70] sm:$0xff]
        %v284 = vld [vmem:[#allocation5 + $0x78] sm:$0xff]
        %v285 = vld [vmem:[#allocation5 + $0x80] sm:$0xff]
        %v286 = vld [vmem:[#allocation5 + $0x88] sm:$0xff]
        %v287 = vld [vmem:[#allocation5 + $0x90] sm:$0xff]
        %v288 = vld [vmem:[#allocation5 + $0x98] sm:$0xff]
        %v289 = vld [vmem:[#allocation5 + $0xa0] sm:$0xff]
        %v290 = vld [vmem:[#allocation5 + $0xa8] sm:$0xff]
        %v291 = vld [vmem:[#allocation5 + $0xb0] sm:$0xff]
        %v292 = vld [vmem:[#allocation5 + $0xb8] sm:$0xff]
        %v293 = vld [vmem:[#allocation5 + $0xc0] sm:$0xf]
        %v294 = vld [vmem:[%s2] sm:$0x1]
        %v296 = vperm.slane %v294, 0
        %vm298 = vcmask 556032
        %v300 = vsel %vm298, %v266, 0
        %v303 = vsel %vm298, %v268, 0
        %vm305 = vcmask 1043456
        %v307 = vsel %vm305, %v293, 0
        %309 = vmatpush.msra.mxu0 %v284
        %310 = vmatpush.msra.mxu0 %v283
        %311 = vmatpush.msra.mxu0 %v282
        %312 = vmatpush.msra.mxu0 %v281
        %313 = vmatpush.msra.mxu0 %v280
        %314 = vmatpush.msra.mxu0 %v279
        %315 = vmatpush.msra.mxu0 %v278
        %316 = vmatpush.msra.mxu0 %v277
        %317 = vmatpush.msra.mxu0 %v276
        %318 = vmatpush.msra.mxu0 %v275
        %319 = vmatpush.msra.mxu0 %v274
        %320 = vmatpush.msra.mxu0 %v273
        %321 = vmatpush.msra.mxu0 %v272
        %322 = vmatpush.msra.mxu0 %v271
        %323 = vmatpush.msra.mxu0 %v270
        %324 = vmatpush.msra.mxu0 %v269
        %325 = vmatmul.f32.gmra.mxu0 %v265
        %v326 = vpop.f32.mrf.mxu0
        %v327 = vadd.f32 %v296, %v326
        %328 = vmatmul.f32.gmra.mxu0 %v267
        %v329 = vpop.f32.mrf.mxu0
        %v330 = vadd.f32 %v296, %v329
        %331 = vdwg.mxu0
        %332 = vmatpush.msra.mxu0 0.0
        %333 = vmatpush.msra.mxu0 0.0
        %334 = vmatpush.msra.mxu0 0.0
        %335 = vmatpush.msra.mxu0 0.0
        %336 = vmatpush.msra.mxu0 0.0
        %337 = vmatpush.msra.mxu0 0.0
        %338 = vmatpush.msra.mxu0 0.0
        %339 = vmatpush.msra.mxu0 %v307
        %340 = vmatpush.msra.mxu0 %v292
        %341 = vmatpush.msra.mxu0 %v291
        %342 = vmatpush.msra.mxu0 %v290
        %343 = vmatpush.msra.mxu0 %v289
        %344 = vmatpush.msra.mxu0 %v288
        %345 = vmatpush.msra.mxu0 %v287
        %346 = vmatpush.msra.mxu0 %v286
        %347 = vmatpush.msra.mxu0 %v285
        %348 = vmatmul.f32.gmra.mxu0 %v300
        %v349 = vpop.f32.mrf.mxu0
        %v350 = vadd.f32 %v327, %v349
        %351 = vmatmul.f32.gmra.mxu0 %v303
        %v352 = vpop.f32.mrf.mxu0
        %v353 = vadd.f32 %v330, %v352
        %354 = vdwg.mxu0
        %355 = vadd.xlane.f32.xlu0 %v350
        %v356 = vpop.xlane.xlu0 %355
        %357 = vadd.xlane.f32.xlu0 %v353
        %v358 = vpop.xlane.xlu0 %357
        %v359 = vmul.f32 %v356, 0.03125
        %v360 = vmul.f32 %v358, 0.03125
        %v361 = vmul.f32 %v350, %v350
        %v362 = vmul.f32 %v353, %v353
        %363 = vadd.xlane.f32.xlu0 %v361
        %v364 = vpop.xlane.xlu0 %363
        %365 = vadd.xlane.f32.xlu0 %v362
        %v366 = vpop.xlane.xlu0 %365
        %v367 = vmul.f32 %v364, 0.03125
        %v368 = vmul.f32 %v366, 0.03125
        %v369 = vmul.f32 %v359, %v359
        %v370 = vmul.f32 %v360, %v360
        %v371 = vsub.f32 %v367, %v369
        %v372 = vsub.f32 %v368, %v370
        %v373 = vmax.f32 %v371, 0.0
        %v374 = vmax.f32 %v372, 0.0
        %v375 = vsub.f32 %v350, %v359
        %v376 = vsub.f32 %v353, %v360
        %v377 = vadd.f32 %v373, 1e-05
        %v378 = vadd.f32 %v374, 1e-05
        %v379 = vrsqrt.pop %v377
        %v380 = vmul.f32 %v379, %v377
        %v381 = vmul.f32 %v380, %v379
        %v382 = vmul.f32 0.5, %v381
        %v383 = vsub.f32 1.5, %v382
        %v384 = vmul.f32 %v379, %v383
        %vm385 = vweird.f32 %v377
        %vm386 = vweird.f32 %v379
        %vm387 = vmor %vm385, %vm386
        %v388 = vsel %vm387, %v379, %v384
        %v389 = vrsqrt.pop %v378
        %v390 = vmul.f32 %v389, %v378
        %v391 = vmul.f32 %v390, %v389
        %v392 = vmul.f32 0.5, %v391
        %v393 = vsub.f32 1.5, %v392
        %v394 = vmul.f32 %v389, %v393
        %vm395 = vweird.f32 %v378
        %vm396 = vweird.f32 %v389
        %vm397 = vmor %vm395, %vm396
        %v398 = vsel %vm397, %v389, %v394
        %v399 = vmul.f32 %v375, %v388
        %v400 = vmul.f32 %v376, %v398
        %v401 = vld [vmem:[%s3] sm:$0x1]
        %v403 = vperm.slane %v401, 0
        %v405 = vmul.f32 %v399, %v403
        %v406 = vmul.f32 %v400, %v403
        %v407 = vld [vmem:[%s4] sm:$0x1]
        %v409 = vperm.slane %v407, 0
        %v411 = vadd.f32 %v405, %v409
        %v412 = vadd.f32 %v406, %v409
        %413 = vst [vmem:[%s262] sm:$0xff] %v411
        %414 = vst [vmem:[%s262 + $0x8] sm:$0xff] %v412
        %s415 = sand.u32 %s141, 1
        %s416 = scalar_lea.sflag [#allocation4], %s415
        %s417 = sand.u32 %s141, 1
        %s418 = smul.addr %s417, 16
        %s419 = scalar_lea.vmem [#allocation7], %s418
        // Predicated region
        $region49: #{tpu_custom_call.1} parent=39 // pred_check
          %p420 = pneg %p151
        $region50: #{tpu_custom_call.1} parent=39 // pred_check_branch
          %422 = sbr.rel (%p420) target = $region52
        $region51: #{tpu_custom_call.1} parent=39 // pred_region
          %s423 = smul.u32 2, %s23
          %425 = vsyncadd %s416, 0
          %s426 = smul.addr %s423, 8
          %s427 = scalar_lea.hbm %s5, %s426
          %s428 = sshll.u32 %s419, 4
          %s429 = int_to_ptr.vmem [resolvable:$true] %s428
          %s430 = sshll.u32 %s427, 4
          %s431 = int_to_ptr.hbm [resolvable:$true] %s430
          %436 = dma.vmem_to_hbm [thread:$0]  %s429, 256, %s431, %s416, 128, 128, 8
        $region52: #{tpu_custom_call.1} parent=39 // pred_fallthru
          _
      $region40: #{tpu_custom_call.1} parent=5 // pred_fallthru
        _
      %p437 = scmp.le.s32.totalorder 2, %s18
      // Predicated region
      $region53: #{tpu_custom_call.1} parent=5 // pred_check
        %p438 = pneg %p437
      $region54: #{tpu_custom_call.1} parent=5 // pred_check_branch
        %440 = sbr.rel (%p438) target = $region56
      $region55: #{tpu_custom_call.1} parent=5 // pred_region
        %s441 = ssub.s32 %s18, 2
        // Predicated region
        $region57: #{tpu_custom_call.1} parent=55 // pred_check
          %p442 = pneg %p157
        $region58: #{tpu_custom_call.1} parent=55 // pred_check_branch
          %444 = sbr.rel (%p442) target = $region60
        $region59: #{tpu_custom_call.1} parent=55 // pred_region
          %s445 = sand.u32 %s142, 1
          %s446 = scalar_lea.sflag [#allocation4], %s445
          %s447 = sand.u32 %s142, 1
          %s448 = smul.addr %s447, 16
          %s449 = scalar_lea.vmem [#allocation7], %s448
          %451 = dma.done %s446, 256
        $region60: #{tpu_custom_call.1} parent=55 // pred_fallthru
          _
      $region56: #{tpu_custom_call.1} parent=5 // pred_fallthru
        _
    $region6: #{tpu_custom_call.1} parent=1 // loop_footer
      %s22 = sadd.s32 1, %s18
    $region7: #{tpu_custom_call.1} parent=1 // loop_footer_branch
      %17 = sbr.rel target = $region3
    $region8: #{tpu_custom_call.1} parent=1 // loop_exit
      _
    %452 = vsyncpa [#allocation3], 1
    %s453 = scalar_lea.sflag [#allocation3], 1
    %454 = vsyncpa %s453, 1
    %455 = vsyncpa [#allocation6], 1
    %456 = vsyncpa [#allocation4], 1
    %s457 = scalar_lea.sflag [#allocation4], 1
    %458 = vsyncpa %s457, 1

// kernel: tpu_custom_call.1
$region0: #{tpu_custom_call.1}
  #allocation0 [shape = 'u32[]', space=smem, size = 0x4, offset = 0x4, fixed_abs, tag = 'smem constant byte address 0x4 - core index']
  #allocation1 [shape = 'u32[72,128]{1,0:T(1,128)}', space=vmem, size = 0x9000, scoped, tag = 'internal scratch']
  %s0 = inlined_call_operand.hbm [shape: f32[32,196], index: 0, kind: input, shape index: {}]
  %s1 = inlined_call_operand.hbm [shape: f32[196,128], index: 1, kind: input, shape index: {}]
  %s2 = inlined_call_operand.vmem [shape: f32[1,128], index: 2, kind: input, shape index: {}]
  %s3 = inlined_call_operand.vmem [shape: f32[1,128], index: 3, kind: input, shape index: {}]
  %s4 = inlined_call_operand.vmem [shape: f32[1,128], index: 4, kind: input, shape index: {}]
  %s5 = inlined_call_operand.hbm [shape: f32[32,128], index: 5, kind: output, shape index: {}]
  %s6 = sld [smem:[#allocation0]]
  $region61: #{tpu_custom_call.1} parent=0
    _
  %s8 = ssub.s32 1, %s6
  %s9 = scalar_select 0, %s8, %s6
  $region1: #{tpu_custom_call.1} parent=0
    #allocation2 [shape = 'u8[32768]{0}', space=vmem, size = 0x8000, scoped, tag = 'input window, operand 0']
    #allocation3 [shape = 's32[2]{0}', space=sflag, size = 0x8, scoped, tag = 'scoped memory for tpu_custom_call.1']
    #allocation4 [shape = 's32[2]{0}', space=sflag, size = 0x8, scoped, tag = 'scoped memory for tpu_custom_call.1']
    #allocation5 [shape = 'u8[102400]{0}', space=vmem, size = 0x19000, scoped, tag = 'input window, operand 1, single buffered']
    #allocation6 [shape = 's32[1]{0}', space=sflag, size = 0x4, scoped, tag = 'scoped memory for tpu_custom_call.1']
    #allocation7 [shape = 'u8[16384]{0}', space=vmem, size = 0x4000, scoped, tag = 'output window, operand 0']
    %10 = vsyncpa [#allocation3], 0
    %s11 = scalar_lea.sflag [#allocation3], 1
    %12 = vsyncpa %s11, 0
    %13 = vsyncpa [#allocation6], 0
    %14 = vsyncpa [#allocation4], 0
    %s15 = scalar_lea.sflag [#allocation4], 1
    %16 = vsyncpa %s15, 0
    loop: start=0, step=1, limit=4
    $region2: #{tpu_custom_call.1} parent=1 // loop_pre_header
      _
    $region3: #{tpu_custom_call.1} parent=1 // loop_header
      %s18 = sphi 0, %s22
      %p19 = scmp.ge.s32.totalorder %s18, 4
      %s28 = sphi 0, %s30
      %s31 = sphi 0, %s28
      %s32 = sphi 0, %s31
      %s48 = sphi 0, %s32
      %s52 = sphi 0, %s52
      %s54 = sphi 0, %s52
      %s55 = sphi 0, %s54
      %s69 = sphi 0, %s55
      %s73 = sphi 0, %s73
      %s75 = sphi 0, %s73
      %s76 = sphi 0, %s75
      %s90 = sphi 0, %s76
      %s94 = sphi 0, %s94
      %s96 = sphi 0, %s94
      %s97 = sphi 0, %s96
      %s111 = sphi 0, %s97
      %s115 = sphi 0, %s115
      %s117 = sphi 0, %s115
      %s118 = sphi 0, %s117
      %s132 = sphi 0, %s118
      %s138 = sphi 0, %s140
      %s141 = sphi 0, %s138
      %s142 = sphi 0, %s141
      %s158 = sphi 0, %s142
    $region4: #{tpu_custom_call.1} parent=1 // loop_header_branch
      %21 = sbr.rel (%p19) target = $region8
    $region5: #{tpu_custom_call.1} parent=1 // loop_body
      %s23 = ssub.s32 %s18, 1
      %s24 = ssub.s32 %s18, 2
      %s25 = sadd.s32 %s18, 1
      %s26 = ssub.s32 %s18, %s25
      %p27 = scmp.eq.s32.totalorder %s26, 0
      %s29 = sadd.s32 %s28, 1
      %s30 = scalar_select %p27, %s28, %s29
      %p33 = pneg %p27
      %p34 = scmp.eq.s32.totalorder %s18, 1
      %p35 = por %p33, %p34
      %p36 = scmp.ne.s32.totalorder %s28, %s31
      %p37 = scmp.eq.s32.totalorder %s18, 0
      %p38 = por %p36, %p37
      %p39 = scmp.ne.s32.totalorder %s28, %s31
      %p40 = scmp.eq.s32.totalorder %s23, 1
      %p41 = por %p39, %p40
      %p42 = scmp.ne.s32.totalorder %s31, %s32
      %p43 = scmp.eq.s32.totalorder %s23, 0
      %p44 = por %p42, %p43
      %p45 = scmp.ne.s32.totalorder %s31, %s32
      %p46 = scmp.eq.s32.totalorder %s24, 1
      %p47 = por %p45, %p46
      %p49 = scmp.ne.s32.totalorder %s32, %s48
      %p50 = scmp.eq.s32.totalorder %s24, 0
      %p51 = por %p49, %p50
      %s53 = sadd.s32 %s52, 1
      %p56 = scmp.eq.s32.totalorder %s18, 1
      %p57 = scmp.ne.s32.totalorder %s52, %s54
      %p58 = scmp.eq.s32.totalorder %s18, 0
      %p59 = por %p57, %p58
      %p60 = scmp.ne.s32.totalorder %s52, %s54
      %p61 = scmp.eq.s32.totalorder %s23, 1
      %p62 = por %p60, %p61
      %p63 = scmp.ne.s32.totalorder %s54, %s55
      %p64 = scmp.eq.s32.totalorder %s23, 0
      %p65 = por %p63, %p64
      %p66 = scmp.ne.s32.totalorder %s54, %s55
      %p67 = scmp.eq.s32.totalorder %s24, 1
      %p68 = por %p66, %p67
      %p70 = scmp.ne.s32.totalorder %s55, %s69
      %p71 = scmp.eq.s32.totalorder %s24, 0
      %p72 = por %p70, %p71
      %s74 = sadd.s32 %s73, 1
      %p77 = scmp.eq.s32.totalorder %s18, 1
      %p78 = scmp.ne.s32.totalorder %s73, %s75
      %p79 = scmp.eq.s32.totalorder %s18, 0
      %p80 = por %p78, %p79
      %p81 = scmp.ne.s32.totalorder %s73, %s75
      %p82 = scmp.eq.s32.totalorder %s23, 1
      %p83 = por %p81, %p82
      %p84 = scmp.ne.s32.totalorder %s75, %s76
      %p85 = scmp.eq.s32.totalorder %s23, 0
      %p86 = por %p84, %p85
      %p87 = scmp.ne.s32.totalorder %s75, %s76
      %p88 = scmp.eq.s32.totalorder %s24, 1
      %p89 = por %p87, %p88
      %p91 = scmp.ne.s32.totalorder %s76, %s90
      %p92 = scmp.eq.s32.totalorder %s24, 0
      %p93 = por %p91, %p92
      %s95 = sadd.s32 %s94, 1
      %p98 = scmp.eq.s32.totalorder %s18, 1
      %p99 = scmp.ne.s32.totalorder %s94, %s96
      %p100 = scmp.eq.s32.totalorder %s18, 0
      %p101 = por %p99, %p100
      %p102 = scmp.ne.s32.totalorder %s94, %s96
      %p103 = scmp.eq.s32.totalorder %s23, 1
      %p104 = por %p102, %p103
      %p105 = scmp.ne.s32.totalorder %s96, %s97
      %p106 = scmp.eq.s32.totalorder %s23, 0
      %p107 = por %p105, %p106
      %p108 = scmp.ne.s32.totalorder %s96, %s97
      %p109 = scmp.eq.s32.totalorder %s24, 1
      %p110 = por %p108, %p109
      %p112 = scmp.ne.s32.totalorder %s97, %s111
      %p113 = scmp.eq.s32.totalorder %s24, 0
      %p114 = por %p112, %p113
      %s116 = sadd.s32 %s115, 1
      %p119 = scmp.eq.s32.totalorder %s18, 1
      %p120 = scmp.ne.s32.totalorder %s115, %s117
      %p121 = scmp.eq.s32.totalorder %s18, 0
      %p122 = por %p120, %p121
      %p123 = scmp.ne.s32.totalorder %s115, %s117
      %p124 = scmp.eq.s32.totalorder %s23, 1
      %p125 = por %p123, %p124
      %p126 = scmp.ne.s32.totalorder %s117, %s118
      %p127 = scmp.eq.s32.totalorder %s23, 0
      %p128 = por %p126, %p127
      %p129 = scmp.ne.s32.totalorder %s117, %s118
      %p130 = scmp.eq.s32.totalorder %s24, 1
      %p131 = por %p129, %p130
      %p133 = scmp.ne.s32.totalorder %s118, %s132
      %p134 = scmp.eq.s32.totalorder %s24, 0
      %p135 = por %p133, %p134
      %s136 = ssub.s32 %s18, %s25
      %p137 = scmp.eq.s32.totalorder %s136, 0
      %s139 = sadd.s32 %s138, 1
      %s140 = scalar_select %p137, %s138, %s139
      %p143 = pneg %p137
      %p144 = scmp.eq.s32.totalorder %s18, 1
      %p145 = por %p143, %p144
      %p146 = scmp.ne.s32.totalorder %s138, %s141
      %p147 = scmp.eq.s32.totalorder %s18, 0
      %p148 = por %p146, %p147
      %p149 = scmp.ne.s32.totalorder %s138, %s141
      %p150 = scmp.eq.s32.totalorder %s23, 1
      %p151 = por %p149, %p150
      %p152 = scmp.ne.s32.totalorder %s141, %s142
      %p153 = scmp.eq.s32.totalorder %s23, 0
      %p154 = por %p152, %p153
      %p155 = scmp.ne.s32.totalorder %s141, %s142
      %p156 = scmp.eq.s32.totalorder %s24, 1
      %p157 = por %p155, %p156
      %p159 = scmp.ne.s32.totalorder %s142, %s158
      %p160 = scmp.eq.s32.totalorder %s24, 0
      %p161 = por %p159, %p160
      %p162 = scmp.le.s32.totalorder 1, %s18
      %p163 = scmp.lt.s32.totalorder %s18, 3
      %p164 = pnand %p162, %p163
      %p165 = pneg %p164
      // Predicated region
      $region9: #{tpu_custom_call.1} parent=5 // pred_check
        _
      $region10: #{tpu_custom_call.1} parent=5 // pred_check_branch
        %167 = sbr.rel (%p164) target = $region12
      $region11: #{tpu_custom_call.1} parent=5 // pred_region
        %s168 = ssub.s32 %s18, 1
        // Predicated region
        $region13: #{tpu_custom_call.1} parent=11 // pred_check
          %p169 = pneg %p65
        $region14: #{tpu_custom_call.1} parent=11 // pred_check_branch
          %171 = sbr.rel (%p169) target = $region16
        $region15: #{tpu_custom_call.1} parent=11 // pred_region
          %173 = vsyncadd [#allocation6], 0
          %s174 = sshll.u32 %s1, 4
          %s175 = int_to_ptr.hbm [resolvable:$true] %s174
          %s176 = sshll.u32 [#allocation5], 4
          %s177 = int_to_ptr.vmem [resolvable:$true] %s176
          %182 = dma.hbm_to_vmem [thread:$0]  %s175, 3200, %s177, [#allocation6], 128, 128, 8
        $region16: #{tpu_custom_call.1} parent=11 // pred_fallthru
          _
        // Predicated region
        $region17: #{tpu_custom_call.1} parent=11 // pred_check
          %p183 = pneg %p86
        $region18: #{tpu_custom_call.1} parent=11 // pred_check_branch
          %185 = sbr.rel (%p183) target = $region20
        $region19: #{tpu_custom_call.1} parent=11 // pred_region
          _
        $region20: #{tpu_custom_call.1} parent=11 // pred_fallthru
          _
        // Predicated region
        $region21: #{tpu_custom_call.1} parent=11 // pred_check
          %p186 = pneg %p107
        $region22: #{tpu_custom_call.1} parent=11 // pred_check_branch
          %188 = sbr.rel (%p186) target = $region24
        $region23: #{tpu_custom_call.1} parent=11 // pred_region
          _
        $region24: #{tpu_custom_call.1} parent=11 // pred_fallthru
          _
        // Predicated region
        $region25: #{tpu_custom_call.1} parent=11 // pred_check
          %p189 = pneg %p128
        $region26: #{tpu_custom_call.1} parent=11 // pred_check_branch
          %191 = sbr.rel (%p189) target = $region28
        $region27: #{tpu_custom_call.1} parent=11 // pred_region
          _
        $region28: #{tpu_custom_call.1} parent=11 // pred_fallthru
          _
      $region12: #{tpu_custom_call.1} parent=5 // pred_fallthru
        _
      %p192 = scmp.lt.s32.totalorder %s18, 2
      // Predicated region
      $region29: #{tpu_custom_call.1} parent=5 // pred_check
        %p193 = pneg %p192
      $region30: #{tpu_custom_call.1} parent=5 // pred_check_branch
        %195 = sbr.rel (%p193) target = $region32
      $region31: #{tpu_custom_call.1} parent=5 // pred_region
        // Predicated region
        $region33: #{tpu_custom_call.1} parent=31 // pred_check
          %p196 = pneg %p38
        $region34: #{tpu_custom_call.1} parent=31 // pred_check_branch
          %198 = sbr.rel (%p196) target = $region36
        $region35: #{tpu_custom_call.1} parent=31 // pred_region
          %s199 = sand.u32 %s28, 1
          %s200 = scalar_lea.sflag [#allocation3], %s199
          %s201 = sand.u32 %s28, 1
          %s202 = smul.addr %s201, 32
          %s203 = scalar_lea.vmem [#allocation2], %s202
          %s204 = smul.u32 2, %s18
          %206 = vsyncadd %s200, 0
          %s207 = smul.addr %s204, 2
          %s208 = smul.addr %s207, 8
          %s209 = scalar_lea.hbm %s0, %s208
          %s210 = sshll.u32 %s209, 4
          %s211 = int_to_ptr.hbm [resolvable:$true] %s210
          %s212 = sshll.u32 %s203, 4
          %s213 = int_to_ptr.vmem [resolvable:$true] %s212
          %218 = dma.hbm_to_vmem [thread:$0]  %s211, 512, %s213, %s200, 256, 256, 16
        $region36: #{tpu_custom_call.1} parent=31 // pred_fallthru
          _
      $region32: #{tpu_custom_call.1} parent=5 // pred_fallthru
        _
      %p219 = scmp.le.s32.totalorder 1, %s18
      %p220 = scmp.lt.s32.totalorder %s18, 3
      %p221 = pnand %p219, %p220
      %p222 = pneg %p221
      // Predicated region
      $region37: #{tpu_custom_call.1} parent=5 // pred_check
        _
      $region38: #{tpu_custom_call.1} parent=5 // pred_check_branch
        %224 = sbr.rel (%p221) target = $region40
      $region39: #{tpu_custom_call.1} parent=5 // pred_region
        %s225 = ssub.s32 %s18, 1
        %s226 = sand.u32 %s31, 1
        %s227 = scalar_lea.sflag [#allocation3], %s226
        %s228 = sand.u32 %s31, 1
        %s229 = smul.addr %s228, 32
        %s230 = scalar_lea.vmem [#allocation2], %s229
        // Predicated region
        $region41: #{tpu_custom_call.1} parent=39 // pred_check
          %p231 = pneg %p44
        $region42: #{tpu_custom_call.1} parent=39 // pred_check_branch
          %233 = sbr.rel (%p231) target = $region44
        $region43: #{tpu_custom_call.1} parent=39 // pred_region
          %235 = dma.done %s227, 512
        $region44: #{tpu_custom_call.1} parent=39 // pred_fallthru
          _
        // Predicated region
        $region45: #{tpu_custom_call.1} parent=39 // pred_check
          %p236 = pneg %p65
        $region46: #{tpu_custom_call.1} parent=39 // pred_check_branch
          %238 = sbr.rel (%p236) target = $region48
        $region47: #{tpu_custom_call.1} parent=39 // pred_region
          %240 = dma.done [#allocation6], 3200
        $region48: #{tpu_custom_call.1} parent=39 // pred_fallthru
          _
        %s241 = sand.u32 %s31, 1
        %s242 = scalar_lea.sflag [#allocation3], %s241
        %s243 = sand.u32 %s31, 1
        %s244 = smul.addr %s243, 32
        %s245 = scalar_lea.vmem [#allocation2], %s244
        %p246 = pneg %p44
        %p247 = pneg %p41
        %p248 = pneg %p65
        %p249 = pneg %p62
        %p250 = pneg %p86
        %p251 = pneg %p83
        %p252 = pneg %p107
        %p253 = pneg %p104
        %p254 = pneg %p128
        %p255 = pneg %p125
        %p256 = pneg %p154
        %p257 = pneg %p151
        %s258 = sand.u32 %s141, 1
        %s259 = scalar_lea.sflag [#allocation4], %s258
        %s260 = sand.u32 %s141, 1
        %s261 = smul.addr %s260, 16
        %s262 = scalar_lea.vmem [#allocation7], %s261
        %s263 = smul.u32 2, %s23
        %s264 = smul.u32 2, %s23
        %v265 = vld [vmem:[%s230] sm:$0xff]
        %v266 = vld [vmem:[%s230 + $0x8] sm:$0xff]
        %v267 = vld [vmem:[%s230 + $0x10] sm:$0xff]
        %v268 = vld [vmem:[%s230 + $0x18] sm:$0xff]
        %v269 = vld [vmem:[#allocation5] sm:$0xff]
        %v270 = vld [vmem:[#allocation5 + $0x8] sm:$0xff]
        %v271 = vld [vmem:[#allocation5 + $0x10] sm:$0xff]
        %v272 = vld [vmem:[#allocation5 + $0x18] sm:$0xff]
        %v273 = vld [vmem:[#allocation5 + $0x20] sm:$0xff]
        %v274 = vld [vmem:[#allocation5 + $0x28] sm:$0xff]
        %v275 = vld [vmem:[#allocation5 + $0x30] sm:$0xff]
        %v276 = vld [vmem:[#allocation5 + $0x38] sm:$0xff]
        %v277 = vld [vmem:[#allocation5 + $0x40] sm:$0xff]
        %v278 = vld [vmem:[#allocation5 + $0x48] sm:$0xff]
        %v279 = vld [vmem:[#allocation5 + $0x50] sm:$0xff]
        %v280 = vld [vmem:[#allocation5 + $0x58] sm:$0xff]
        %v281 = vld [vmem:[#allocation5 + $0x60] sm:$0xff]
        %v282 = vld [vmem:[#allocation5 + $0x68] sm:$0xff]
        %v283 = vld [vmem:[#allocation5 + $0x70] sm:$0xff]
        %v284 = vld [vmem:[#allocation5 + $0x78] sm:$0xff]
        %v285 = vld [vmem:[#allocation5 + $0x80] sm:$0xff]
        %v286 = vld [vmem:[#allocation5 + $0x88] sm:$0xff]
        %v287 = vld [vmem:[#allocation5 + $0x90] sm:$0xff]
        %v288 = vld [vmem:[#allocation5 + $0x98] sm:$0xff]
        %v289 = vld [vmem:[#allocation5 + $0xa0] sm:$0xff]
        %v290 = vld [vmem:[#allocation5 + $0xa8] sm:$0xff]
        %v291 = vld [vmem:[#allocation5 + $0xb0] sm:$0xff]
        %v292 = vld [vmem:[#allocation5 + $0xb8] sm:$0xff]
        %v293 = vld [vmem:[#allocation5 + $0xc0] sm:$0xf]
        %v294 = vld [vmem:[%s2] sm:$0x1]
        %v296 = vperm.slane %v294, 0
        %vm298 = vcmask 556032
        %v300 = vsel %vm298, %v266, 0
        %v303 = vsel %vm298, %v268, 0
        %vm305 = vcmask 1043456
        %v307 = vsel %vm305, %v293, 0
        %309 = vmatpush.msra.mxu0 %v284
        %310 = vmatpush.msra.mxu0 %v283
        %311 = vmatpush.msra.mxu0 %v282
        %312 = vmatpush.msra.mxu0 %v281
        %313 = vmatpush.msra.mxu0 %v280
        %314 = vmatpush.msra.mxu0 %v279
        %315 = vmatpush.msra.mxu0 %v278
        %316 = vmatpush.msra.mxu0 %v277
        %317 = vmatpush.msra.mxu0 %v276
        %318 = vmatpush.msra.mxu0 %v275
        %319 = vmatpush.msra.mxu0 %v274
        %320 = vmatpush.msra.mxu0 %v273
        %321 = vmatpush.msra.mxu0 %v272
        %322 = vmatpush.msra.mxu0 %v271
        %323 = vmatpush.msra.mxu0 %v270
        %324 = vmatpush.msra.mxu0 %v269
        %325 = vmatmul.f32.gmra.mxu0 %v265
        %v326 = vpop.f32.mrf.mxu0
        %v327 = vadd.f32 %v296, %v326
        %328 = vmatmul.f32.gmra.mxu0 %v267
        %v329 = vpop.f32.mrf.mxu0
        %v330 = vadd.f32 %v296, %v329
        %331 = vdwg.mxu0
        %332 = vmatpush.msra.mxu0 0.0
        %333 = vmatpush.msra.mxu0 0.0
        %334 = vmatpush.msra.mxu0 0.0
        %335 = vmatpush.msra.mxu0 0.0
        %336 = vmatpush.msra.mxu0 0.0
        %337 = vmatpush.msra.mxu0 0.0
        %338 = vmatpush.msra.mxu0 0.0
        %339 = vmatpush.msra.mxu0 %v307
        %340 = vmatpush.msra.mxu0 %v292
        %341 = vmatpush.msra.mxu0 %v291
        %342 = vmatpush.msra.mxu0 %v290
        %343 = vmatpush.msra.mxu0 %v289
        %344 = vmatpush.msra.mxu0 %v288
        %345 = vmatpush.msra.mxu0 %v287
        %346 = vmatpush.msra.mxu0 %v286
        %347 = vmatpush.msra.mxu0 %v285
        %348 = vmatmul.f32.gmra.mxu0 %v300
        %v349 = vpop.f32.mrf.mxu0
        %v350 = vadd.f32 %v327, %v349
        %351 = vmatmul.f32.gmra.mxu0 %v303
        %v352 = vpop.f32.mrf.mxu0
        %v353 = vadd.f32 %v330, %v352
        %354 = vdwg.mxu0
        %355 = vadd.xlane.f32.xlu0 %v350
        %v356 = vpop.xlane.xlu0 %355
        %357 = vadd.xlane.f32.xlu0 %v353
        %v358 = vpop.xlane.xlu0 %357
        %v359 = vmul.f32 %v356, 0.03125
        %v360 = vmul.f32 %v358, 0.03125
        %v361 = vmul.f32 %v350, %v350
        %v362 = vmul.f32 %v353, %v353
        %363 = vadd.xlane.f32.xlu0 %v361
        %v364 = vpop.xlane.xlu0 %363
        %365 = vadd.xlane.f32.xlu0 %v362
        %v366 = vpop.xlane.xlu0 %365
        %v367 = vmul.f32 %v364, 0.03125
        %v368 = vmul.f32 %v366, 0.03125
        %v369 = vmul.f32 %v359, %v359
        %v370 = vmul.f32 %v360, %v360
        %v371 = vsub.f32 %v367, %v369
        %v372 = vsub.f32 %v368, %v370
        %v373 = vmax.f32 %v371, 0.0
        %v374 = vmax.f32 %v372, 0.0
        %v375 = vsub.f32 %v350, %v359
        %v376 = vsub.f32 %v353, %v360
        %v377 = vadd.f32 %v373, 1e-05
        %v378 = vadd.f32 %v374, 1e-05
        %v379 = vrsqrt.pop %v377
        %v380 = vmul.f32 %v379, %v377
        %v381 = vmul.f32 %v380, %v379
        %v382 = vmul.f32 0.5, %v381
        %v383 = vsub.f32 1.5, %v382
        %v384 = vmul.f32 %v379, %v383
        %vm385 = vweird.f32 %v377
        %vm386 = vweird.f32 %v379
        %vm387 = vmor %vm385, %vm386
        %v388 = vsel %vm387, %v379, %v384
        %v389 = vrsqrt.pop %v378
        %v390 = vmul.f32 %v389, %v378
        %v391 = vmul.f32 %v390, %v389
        %v392 = vmul.f32 0.5, %v391
        %v393 = vsub.f32 1.5, %v392
        %v394 = vmul.f32 %v389, %v393
        %vm395 = vweird.f32 %v378
        %vm396 = vweird.f32 %v389
        %vm397 = vmor %vm395, %vm396
        %v398 = vsel %vm397, %v389, %v394
        %v399 = vmul.f32 %v375, %v388
        %v400 = vmul.f32 %v376, %v398
        %v401 = vld [vmem:[%s3] sm:$0x1]
        %v403 = vperm.slane %v401, 0
        %v405 = vmul.f32 %v399, %v403
        %v406 = vmul.f32 %v400, %v403
        %v407 = vld [vmem:[%s4] sm:$0x1]
        %v409 = vperm.slane %v407, 0
        %v411 = vadd.f32 %v405, %v409
        %v412 = vadd.f32 %v406, %v409
        %413 = vst [vmem:[%s262] sm:$0xff] %v411
        %414 = vst [vmem:[%s262 + $0x8] sm:$0xff] %v412
        %s415 = sand.u32 %s141, 1
        %s416 = scalar_lea.sflag [#allocation4], %s415
        %s417 = sand.u32 %s141, 1
        %s418 = smul.addr %s417, 16
        %s419 = scalar_lea.vmem [#allocation7], %s418
        // Predicated region
        $region49: #{tpu_custom_call.1} parent=39 // pred_check
          %p420 = pneg %p151
        $region50: #{tpu_custom_call.1} parent=39 // pred_check_branch
          %422 = sbr.rel (%p420) target = $region52
        $region51: #{tpu_custom_call.1} parent=39 // pred_region
          %s423 = smul.u32 2, %s23
          %425 = vsyncadd %s416, 0
          %s426 = smul.addr %s423, 8
          %s427 = scalar_lea.hbm %s5, %s426
          %s428 = sshll.u32 %s419, 4
          %s429 = int_to_ptr.vmem [resolvable:$true] %s428
          %s430 = sshll.u32 %s427, 4
          %s431 = int_to_ptr.hbm [resolvable:$true] %s430
          %436 = dma.vmem_to_hbm [thread:$0]  %s429, 256, %s431, %s416, 128, 128, 8
        $region52: #{tpu_custom_call.1} parent=39 // pred_fallthru
          _
      $region40: #{tpu_custom_call.1} parent=5 // pred_fallthru
        _
      %p437 = scmp.le.s32.totalorder 2, %s18
      // Predicated region
      $region53: #{tpu_custom_call.1} parent=5 // pred_check
        %p438 = pneg %p437
      $region54: #{tpu_custom_call.1} parent=5 // pred_check_branch
        %440 = sbr.rel (%p438) target = $region56
      $region55: #{tpu_custom_call.1} parent=5 // pred_region
        %s441 = ssub.s32 %s18, 2
        // Predicated region
        $region57: #{tpu_custom_call.1} parent=55 // pred_check
          %p442 = pneg %p157
        $region58: #{tpu_custom_call.1} parent=55 // pred_check_branch
          %444 = sbr.rel (%p442) target = $region60
        $region59: #{tpu_custom_call.1} parent=55 // pred_region
          %s445 = sand.u32 %s142, 1
          %s446 = scalar_lea.sflag [#allocation4], %s445
          %s447 = sand.u32 %s142, 1
          %s448 = smul.addr %s447, 16
          %s449 = scalar_lea.vmem [#allocation7], %s448
          %451 = dma.done %s446, 256
        $region60: #{tpu_custom_call.1} parent=55 // pred_fallthru
          _
      $region56: #{tpu_custom_call.1} parent=5 // pred_fallthru
        _
    $region6: #{tpu_custom_call.1} parent=1 // loop_footer
      %s22 = sadd.s32 1, %s18
    $region7: #{tpu_custom_call.1} parent=1 // loop_footer_branch
      %17 = sbr.rel target = $region3
    $region8: #{tpu_custom_call.1} parent=1 // loop_exit
      _
    %452 = vsyncpa [#allocation3], 1
    %s453 = scalar_lea.sflag [#allocation3], 1
    %454 = vsyncpa %s453, 1
    %455 = vsyncpa [#allocation6], 1
    %456 = vsyncpa [#allocation4], 1
    %s457 = scalar_lea.sflag [#allocation4], 1
    %458 = vsyncpa %s457, 1

</llo_original>
